<compile_context>
chip_gen: v7x
topology: tpu7x:2x2x1
jax: 0.10.0
libtpu: 0.0.40
codegen_flags: <defaults>
</compile_context>

<pallas_src>
import jax
import jax.numpy as jnp
from jax.experimental import pallas as pl
from jax.experimental.pallas import tpu as pltpu

# ---------------------------------------------------------------------------
# Model dimensions (small, synthetic).
T = 8        # number of (aligned) audio/video frames
FA = 32      # audio feature dim
FV = 32      # video feature dim (flattened visual embedding per frame)
D = 32       # encoder hidden / output dim
V = 128      # vocabulary size for the joiner projection
LANES = 128  # lane width of the packed weight slab / outputs
EPS = 1e-5

# Packed bf16 weight-slab row offsets (16-aligned so bf16 sublane packing and
# in-kernel slices stay clean).  Lane width is 128 everywhere.
R_WFRONT = 0                    # rows [0, 64)    : [wa; wv] fused front-end (cols [0,D))
R_WENC = FA + FV                # rows [64, 192)  : wenc padded to K=128 (cols [0,D))
R_W2 = R_WENC + LANES           # rows [192, 320) : W2 = wenc @ wvoc, padded to K=128
R_B1 = R_W2 + LANES             # row  320        : b1   (lanes [0,D))
R_BENC = R_B1 + 16              # row  336        : benc (lanes [0,D))
R_B2 = R_BENC + 16              # row  352        : b2 = benc @ wvoc + bvoc (all V lanes)
W_SLAB_ROWS = R_B2 + 16         # 368

OUT_ROWS = 2 * T                # rows [0,T): feats, rows [T,2T): token row (replicated)


def av_asr_kernel(x_ref, w_ref, out_ref):
    x = x_ref[...].astype(jnp.float32)                           # (T, FA+FV)

    # --- preprocessor: per-stream normalization via lane mask ---------------
    lane_x = jax.lax.broadcasted_iota(jnp.int32, (T, FA + FV), 1)
    is_audio = lane_x < FA
    na = jnp.float32(T * FA)
    nv = jnp.float32(T * FV)
    a_mean = jnp.sum(jnp.where(is_audio, x, 0.0)) / na
    v_mean = jnp.sum(jnp.where(is_audio, 0.0, x)) / nv
    xc = x - jnp.where(is_audio, a_mean, v_mean)
    sq = xc * xc
    a_var = jnp.sum(jnp.where(is_audio, sq, 0.0)) / na
    v_var = jnp.sum(jnp.where(is_audio, 0.0, sq)) / nv
    scale = jnp.where(is_audio,
                      jax.lax.rsqrt(a_var + EPS),
                      jax.lax.rsqrt(v_var + EPS))
    xn = xc * scale                                              # (T, FA+FV)

    # --- model: fused audio/video front-end (single K=64 MXU matmul) --------
    w_front = w_ref[R_WFRONT:R_WFRONT + FA + FV, :].astype(jnp.float32)  # (64, 128)
    b1 = w_ref[R_B1:R_B1 + 1, :].astype(jnp.float32)                     # (1, 128)
    h = jnp.dot(xn, w_front, preferred_element_type=jnp.float32) + b1
    h = jnp.maximum(h, 0.0)                                      # (T, 128); lanes >= D are 0

    # --- second stage: feats and (folded) joiner logits, both from h --------
    wenc = w_ref[R_WENC:R_WENC + LANES, :].astype(jnp.float32)   # (128, 128)
    benc = w_ref[R_BENC:R_BENC + 1, :].astype(jnp.float32)       # (1, 128)
    w2 = w_ref[R_W2:R_W2 + LANES, :].astype(jnp.float32)         # (128, 128)
    b2 = w_ref[R_B2:R_B2 + 1, :].astype(jnp.float32)             # (1, 128)
    feats = jnp.dot(h, wenc, preferred_element_type=jnp.float32) + benc   # (T, 128)
    logits = jnp.dot(h, w2, preferred_element_type=jnp.float32) + b2      # (T, V)

    # --- decoder stand-in: greedy per-frame token reduction ------------------
    # TODO(synk): RNN-T beam search (width 10) with carried state and
    # SentencePiece detokenization have no Pallas equivalent; greedy argmax
    # token ids stand in for the transcript string.
    mx = jnp.max(logits, axis=1, keepdims=True)                  # (T, 1)
    lane_v = jax.lax.broadcasted_iota(jnp.int32, (T, V), 1)
    cand = jnp.where(logits == mx, lane_v, jnp.int32(V))
    tok_col = jnp.min(cand, axis=1, keepdims=True).astype(jnp.float32)    # (T, 1)
    sub = jax.lax.broadcasted_iota(jnp.int32, (T, V), 0)
    tok_row = jnp.sum(jnp.where(sub == lane_v, tok_col, 0.0),
                      axis=0, keepdims=True)                     # (1, V) f32 (exact ints)

    # --- single lane-dense fused output store --------------------------------
    out_ref[0:T, :] = feats
    out_ref[T:2 * T, :] = jnp.broadcast_to(tok_row, (T, V))


def init_params(key):
    ks = jax.random.split(key, 7)
    wa = jax.random.normal(ks[0], (FA, D), jnp.float32) * (1.0 / jnp.sqrt(FA))
    wv = jax.random.normal(ks[1], (FV, D), jnp.float32) * (1.0 / jnp.sqrt(FV))
    b1 = jax.random.normal(ks[2], (D,), jnp.float32) * 0.01
    wenc = jax.random.normal(ks[3], (D, D), jnp.float32) * (1.0 / jnp.sqrt(D))
    benc = jax.random.normal(ks[4], (D,), jnp.float32) * 0.01
    wvoc = jax.random.normal(ks[5], (D, V), jnp.float32) * (1.0 / jnp.sqrt(D))
    bvoc = jax.random.normal(ks[6], (V,), jnp.float32) * 0.01

    # Fold encoder->joiner offline (mathematically identical):
    #   logits = feats @ wvoc + bvoc = h @ (wenc @ wvoc) + (benc @ wvoc + bvoc)
    w2 = wenc @ wvoc                          # (D, V)
    b2 = benc @ wvoc + bvoc                   # (V,)

    # Pack everything into ONE 128-lane-wide bf16 slab (one DMA at launch).
    slab = jnp.zeros((W_SLAB_ROWS, LANES), jnp.float32)
    slab = slab.at[R_WFRONT:R_WFRONT + FA, :D].set(wa)
    slab = slab.at[R_WFRONT + FA:R_WFRONT + FA + FV, :D].set(wv)
    slab = slab.at[R_WENC:R_WENC + D, :D].set(wenc)
    slab = slab.at[R_W2:R_W2 + D, :].set(w2)
    slab = slab.at[R_B1, :D].set(b1)
    slab = slab.at[R_BENC, :D].set(benc)
    slab = slab.at[R_B2, :].set(b2)
    return slab.astype(jnp.bfloat16)


def inference_pipeline(audio, video, w_slab):
    """Mirrors InferencePipeline.forward: returns (feats[1,T,D], length, tokens[T])."""
    # Fuse the two streams into one lane-contiguous HBM input (1 DMA).
    x = jnp.concatenate([audio, video], axis=1)                  # (T, FA+FV)

    def full_spec(shape):
        return pl.BlockSpec(shape, lambda i: (0,) * len(shape))

    out = pl.pallas_call(
        av_asr_kernel,
        out_shape=jax.ShapeDtypeStruct((OUT_ROWS, LANES), jnp.float32),
        grid=(1,),
        in_specs=[full_spec(x.shape), full_spec(w_slab.shape)],
        out_specs=full_spec((OUT_ROWS, LANES)),
        compiler_params=pltpu.CompilerParams(
            dimension_semantics=("arbitrary",)),
    )(x, w_slab)

    feats = out[:T, :D][None]                       # model(audio.unsqueeze(0), ...)
    length = jnp.array([feats.shape[1]], jnp.int32)
    transcript_tokens = out[T, :T].astype(jnp.int32)  # stand-in for detokenized string
    return feats, length, transcript_tokens


def reference(audio, video, w_slab):
    w = w_slab.astype(jnp.float32)
    wf = w[R_WFRONT:R_WFRONT + FA + FV]             # (64, 128)
    wenc = w[R_WENC:R_WENC + LANES]                 # (128, 128)
    w2 = w[R_W2:R_W2 + LANES]                       # (128, 128)
    b1 = w[R_B1]                                    # (128,)
    benc = w[R_BENC]
    b2 = w[R_B2]

    a = (audio - audio.mean()) * jax.lax.rsqrt(audio.var() + EPS)
    v = (video - video.mean()) * jax.lax.rsqrt(video.var() + EPS)
    x = jnp.concatenate([a, v], axis=1)             # (T, 64)
    h = jnp.maximum(x @ wf + b1, 0.0)               # (T, 128)
    feats = (h @ wenc + benc)[:, :D]
    logits = h @ w2 + b2
    return feats[None], jnp.argmax(logits, axis=-1).astype(jnp.int32)


if __name__ == "__main__":
    key = jax.random.PRNGKey(0)
    k_audio, k_video, k_param = jax.random.split(key, 3)
    audio = jax.random.normal(k_audio, (T, FA), jnp.float32)
    video = jax.random.normal(k_video, (T, FV), jnp.float32)
    w_slab = init_params(k_param)

    feats, length, tokens = inference_pipeline(audio, video, w_slab)
    jax.block_until_ready((feats, length, tokens))

    ref_feats, ref_tokens = reference(audio, video, w_slab)
    assert feats.shape == (1, T, D)
    assert int(length[0]) == T
    assert jnp.allclose(feats, ref_feats, atol=1e-4, rtol=1e-4)
    assert jnp.array_equal(tokens, ref_tokens)
    print("KERNEL_OK")
</pallas_src>

<mosaic_0001>
module attributes {stable_mosaic.version = 11 : i64} {
  func.func @av_asr_kernel(%arg0: i32, %arg1: memref<8x64xf32, #tpu.memory_space<vmem>>, %arg2: memref<368x128xbf16, #tpu.memory_space<vmem>>, %arg3: memref<16x128xf32, #tpu.memory_space<vmem>>) attributes {dimension_semantics = [#tpu.dimension_semantics<arbitrary>], iteration_bounds = array<i64: 1>, scalar_prefetch = 0 : i64, scratch_operands = 0 : i64, tpu.core_type = #tpu.core_type<tc>, window_params = [{pipeline_mode = #tpu.pipeline_mode<synchronous>, transform_indices = @transform_0, window_bounds = array<i64: 8, 64>}, {pipeline_mode = #tpu.pipeline_mode<synchronous>, transform_indices = @transform_1, window_bounds = array<i64: 368, 128>}, {pipeline_mode = #tpu.pipeline_mode<synchronous>, transform_indices = @transform_2, window_bounds = array<i64: 16, 128>}]} {
    %c0 = arith.constant 0 : index
    %c0_0 = arith.constant 0 : index
    %0 = vector.load %arg1[%c0, %c0_0] : memref<8x64xf32, #tpu.memory_space<vmem>>, vector<8x64xf32>
    %1 = tpu.iota {dimensions = array<i32: 1>} : vector<8x64xi32>
    %c32_i32 = arith.constant 32 : i32
    %2 = vector.broadcast %c32_i32 : i32 to vector<8x64xi32>
    %3 = arith.cmpi slt, %1, %2 : vector<8x64xi32>
    %cst = arith.constant 0.000000e+00 : f32
    %4 = vector.broadcast %cst : f32 to vector<8x64xf32>
    %5 = arith.select %3, %0, %4 : vector<8x64xi1>, vector<8x64xf32>
    %6 = vector.shape_cast %5 : vector<8x64xf32> to vector<1x8x64xf32>
    %cst_1 = arith.constant dense<0.000000e+00> : vector<1xf32>
    %7 = vector.multi_reduction <add>, %6, %cst_1 [1, 2] : vector<1x8x64xf32> to vector<1xf32>
    %8 = vector.shape_cast %7 : vector<1xf32> to vector<1x1x1xf32>
    %9 = vector.extract %8[0, 0, 0] : f32 from vector<1x1x1xf32>
    %cst_2 = arith.constant 2.560000e+02 : f32
    %10 = arith.divf %9, %cst_2 : f32
    %cst_3 = arith.constant 0.000000e+00 : f32
    %11 = vector.broadcast %cst_3 : f32 to vector<8x64xf32>
    %12 = arith.select %3, %11, %0 : vector<8x64xi1>, vector<8x64xf32>
    %13 = vector.shape_cast %12 : vector<8x64xf32> to vector<1x8x64xf32>
    %cst_4 = arith.constant dense<0.000000e+00> : vector<1xf32>
    %14 = vector.multi_reduction <add>, %13, %cst_4 [1, 2] : vector<1x8x64xf32> to vector<1xf32>
    %15 = vector.shape_cast %14 : vector<1xf32> to vector<1x1x1xf32>
    %16 = vector.extract %15[0, 0, 0] : f32 from vector<1x1x1xf32>
    %cst_5 = arith.constant 2.560000e+02 : f32
    %17 = arith.divf %16, %cst_5 : f32
    %18 = vector.broadcast %10 : f32 to vector<8x64xf32>
    %19 = vector.broadcast %17 : f32 to vector<8x64xf32>
    %20 = arith.select %3, %18, %19 : vector<8x64xi1>, vector<8x64xf32>
    %21 = arith.subf %0, %20 : vector<8x64xf32>
    %22 = arith.mulf %21, %21 : vector<8x64xf32>
    %cst_6 = arith.constant 0.000000e+00 : f32
    %23 = vector.broadcast %cst_6 : f32 to vector<8x64xf32>
    %24 = arith.select %3, %22, %23 : vector<8x64xi1>, vector<8x64xf32>
    %25 = vector.shape_cast %24 : vector<8x64xf32> to vector<1x8x64xf32>
    %cst_7 = arith.constant dense<0.000000e+00> : vector<1xf32>
    %26 = vector.multi_reduction <add>, %25, %cst_7 [1, 2] : vector<1x8x64xf32> to vector<1xf32>
    %27 = vector.shape_cast %26 : vector<1xf32> to vector<1x1x1xf32>
    %28 = vector.extract %27[0, 0, 0] : f32 from vector<1x1x1xf32>
    %cst_8 = arith.constant 2.560000e+02 : f32
    %29 = arith.divf %28, %cst_8 : f32
    %cst_9 = arith.constant 0.000000e+00 : f32
    %30 = vector.broadcast %cst_9 : f32 to vector<8x64xf32>
    %31 = arith.select %3, %30, %22 : vector<8x64xi1>, vector<8x64xf32>
    %32 = vector.shape_cast %31 : vector<8x64xf32> to vector<1x8x64xf32>
    %cst_10 = arith.constant dense<0.000000e+00> : vector<1xf32>
    %33 = vector.multi_reduction <add>, %32, %cst_10 [1, 2] : vector<1x8x64xf32> to vector<1xf32>
    %34 = vector.shape_cast %33 : vector<1xf32> to vector<1x1x1xf32>
    %35 = vector.extract %34[0, 0, 0] : f32 from vector<1x1x1xf32>
    %cst_11 = arith.constant 2.560000e+02 : f32
    %36 = arith.divf %35, %cst_11 : f32
    %cst_12 = arith.constant 9.99999974E-6 : f32
    %37 = arith.addf %29, %cst_12 : f32
    %38 = math.rsqrt %37 : f32
    %cst_13 = arith.constant 9.99999974E-6 : f32
    %39 = arith.addf %36, %cst_13 : f32
    %40 = math.rsqrt %39 : f32
    %41 = vector.broadcast %38 : f32 to vector<8x64xf32>
    %42 = vector.broadcast %40 : f32 to vector<8x64xf32>
    %43 = arith.select %3, %41, %42 : vector<8x64xi1>, vector<8x64xf32>
    %44 = arith.mulf %21, %43 : vector<8x64xf32>
    %c0_14 = arith.constant 0 : index
    %c0_15 = arith.constant 0 : index
    %45 = vector.load %arg2[%c0_14, %c0_15] : memref<368x128xbf16, #tpu.memory_space<vmem>>, vector<64x128xbf16>
    %46 = arith.extf %45 : vector<64x128xbf16> to vector<64x128xf32>
    %c320 = arith.constant 320 : index
    %c0_16 = arith.constant 0 : index
    %47 = vector.load %arg2[%c320, %c0_16] : memref<368x128xbf16, #tpu.memory_space<vmem>>, vector<1x128xbf16>
    %48 = arith.extf %47 : vector<1x128xbf16> to vector<1x128xf32>
    %cst_17 = arith.constant dense<0.000000e+00> : vector<8x128xf32>
    %49 = tpu.matmul %44, %46, %cst_17 {dimension_numbers = #tpu.dot_dimension_numbers<[1], [0], [0], [1], [0, 0, 1, 1], [], []>} : vector<8x64xf32>, vector<64x128xf32>, vector<8x128xf32> -> vector<8x128xf32>
    %50 = vector.broadcast %48 : vector<1x128xf32> to vector<8x128xf32>
    %51 = arith.addf %49, %50 : vector<8x128xf32>
    %cst_18 = arith.constant 0.000000e+00 : f32
    %52 = vector.broadcast %cst_18 : f32 to vector<8x128xf32>
    %53 = arith.maximumf %51, %52 : vector<8x128xf32>
    %c64 = arith.constant 64 : index
    %c0_19 = arith.constant 0 : index
    %54 = vector.load %arg2[%c64, %c0_19] : memref<368x128xbf16, #tpu.memory_space<vmem>>, vector<128x128xbf16>
    %55 = arith.extf %54 : vector<128x128xbf16> to vector<128x128xf32>
    %c336 = arith.constant 336 : index
    %c0_20 = arith.constant 0 : index
    %56 = vector.load %arg2[%c336, %c0_20] : memref<368x128xbf16, #tpu.memory_space<vmem>>, vector<1x128xbf16>
    %57 = arith.extf %56 : vector<1x128xbf16> to vector<1x128xf32>
    %c192 = arith.constant 192 : index
    %c0_21 = arith.constant 0 : index
    %58 = vector.load %arg2[%c192, %c0_21] : memref<368x128xbf16, #tpu.memory_space<vmem>>, vector<128x128xbf16>
    %59 = arith.extf %58 : vector<128x128xbf16> to vector<128x128xf32>
    %c352 = arith.constant 352 : index
    %c0_22 = arith.constant 0 : index
    %60 = vector.load %arg2[%c352, %c0_22] : memref<368x128xbf16, #tpu.memory_space<vmem>>, vector<1x128xbf16>
    %61 = arith.extf %60 : vector<1x128xbf16> to vector<1x128xf32>
    %cst_23 = arith.constant dense<0.000000e+00> : vector<8x128xf32>
    %62 = tpu.matmul %53, %55, %cst_23 {dimension_numbers = #tpu.dot_dimension_numbers<[1], [0], [0], [1], [0, 0, 1, 1], [], []>} : vector<8x128xf32>, vector<128x128xf32>, vector<8x128xf32> -> vector<8x128xf32>
    %63 = vector.broadcast %57 : vector<1x128xf32> to vector<8x128xf32>
    %64 = arith.addf %62, %63 : vector<8x128xf32>
    %cst_24 = arith.constant dense<0.000000e+00> : vector<8x128xf32>
    %65 = tpu.matmul %53, %59, %cst_24 {dimension_numbers = #tpu.dot_dimension_numbers<[1], [0], [0], [1], [0, 0, 1, 1], [], []>} : vector<8x128xf32>, vector<128x128xf32>, vector<8x128xf32> -> vector<8x128xf32>
    %66 = vector.broadcast %61 : vector<1x128xf32> to vector<8x128xf32>
    %67 = arith.addf %65, %66 : vector<8x128xf32>
    %cst_25 = arith.constant dense<0xFF800000> : vector<8xf32>
    %68 = vector.multi_reduction <maximumf>, %67, %cst_25 [1] : vector<8x128xf32> to vector<8xf32>
    %69 = vector.shape_cast %68 : vector<8xf32> to vector<8x1xf32>
    %70 = tpu.iota {dimensions = array<i32: 1>} : vector<8x128xi32>
    %71 = vector.broadcast %69 : vector<8x1xf32> to vector<8x128xf32>
    %72 = arith.cmpf oeq, %67, %71 : vector<8x128xf32>
    %c128_i32 = arith.constant 128 : i32
    %73 = vector.broadcast %c128_i32 : i32 to vector<8x128xi32>
    %74 = arith.select %72, %70, %73 : vector<8x128xi1>, vector<8x128xi32>
    %cst_26 = arith.constant dense<2147483647> : vector<8xi32>
    %75 = vector.multi_reduction <minsi>, %74, %cst_26 [1] : vector<8x128xi32> to vector<8xi32>
    %76 = vector.shape_cast %75 : vector<8xi32> to vector<8x1xi32>
    %77 = arith.sitofp %76 : vector<8x1xi32> to vector<8x1xf32>
    %78 = tpu.iota {dimensions = array<i32: 0>} : vector<8x128xi32>
    %79 = arith.cmpi eq, %78, %70 : vector<8x128xi32>
    %cst_27 = arith.constant 0.000000e+00 : f32
    %80 = vector.shape_cast %77 : vector<8x1xf32> to vector<8x1xf32>
    %81 = vector.broadcast %80 : vector<8x1xf32> to vector<8x128xf32>
    %82 = vector.broadcast %cst_27 : f32 to vector<8x128xf32>
    %83 = arith.select %79, %81, %82 : vector<8x128xi1>, vector<8x128xf32>
    %cst_28 = arith.constant dense<0.000000e+00> : vector<128xf32>
    %84 = vector.multi_reduction <add>, %83, %cst_28 [0] : vector<8x128xf32> to vector<128xf32>
    %85 = vector.shape_cast %84 : vector<128xf32> to vector<1x128xf32>
    %c0_29 = arith.constant 0 : index
    %c0_30 = arith.constant 0 : index
    %86 = vector.load %arg3[%c0_29, %c0_30] : memref<16x128xf32, #tpu.memory_space<vmem>>, vector<8x128xf32>
    tpu.vector_store %arg3[%c0_29, %c0_30], %64 {strides = array<i32>} : memref<16x128xf32, #tpu.memory_space<vmem>>, vector<8x128xf32>,
    %87 = vector.shape_cast %85 : vector<1x128xf32> to vector<1x128xf32>
    %88 = vector.broadcast %87 : vector<1x128xf32> to vector<8x128xf32>
    %c8 = arith.constant 8 : index
    %c0_31 = arith.constant 0 : index
    %89 = vector.load %arg3[%c8, %c0_31] : memref<16x128xf32, #tpu.memory_space<vmem>>, vector<8x128xf32>
    tpu.vector_store %arg3[%c8, %c0_31], %88 {strides = array<i32>} : memref<16x128xf32, #tpu.memory_space<vmem>>, vector<8x128xf32>,
    return
  }
  func.func @transform_0(%arg0: i32) -> (i32, i32) {
    %c0_i32 = arith.constant 0 : i32
    %c0_i32_0 = arith.constant 0 : i32
    %c0_i32_1 = arith.constant 0 : i32
    return %c0_i32, %c0_i32_0 : i32, i32
  }
  func.func @transform_1(%arg0: i32) -> (i32, i32) {
    %c0_i32 = arith.constant 0 : i32
    %c0_i32_0 = arith.constant 0 : i32
    %c0_i32_1 = arith.constant 0 : i32
    return %c0_i32, %c0_i32_0 : i32, i32
  }
  func.func @transform_2(%arg0: i32) -> (i32, i32) {
    %c0_i32 = arith.constant 0 : i32
    %c0_i32_0 = arith.constant 0 : i32
    %c0_i32_1 = arith.constant 0 : i32
    return %c0_i32, %c0_i32_0 : i32, i32
  }
}

</mosaic_0001>

<llo_original>
// kernel: tpu_custom_call.1
$region0: #{tpu_custom_call.1}
  #allocation0 [shape = 'u32[]', space=smem, size = 0x4, offset = 0x4, fixed_abs, tag = 'smem constant byte address 0x4 - core index']
  #allocation1 [shape = 'u32[144,128]{1,0:T(1,128)}', space=vmem, size = 0x12000, scoped, tag = 'internal scratch']
  %s0 = inlined_call_operand.hbm [shape: f32[8,64], index: 0, kind: input, shape index: {}]
  %s1 = inlined_call_operand.hbm [shape: bf16[368,128], index: 1, kind: input, shape index: {}]
  %s2 = inlined_call_operand.hbm [shape: f32[16,128], index: 2, kind: output, shape index: {}]
  %s3 = sld [smem:[#allocation0]]
  $region26: #{tpu_custom_call.1} parent=0
    _
  %s5 = ssub.s32 1, %s3
  %s6 = scalar_select 0, %s5, %s3
  $region1: #{tpu_custom_call.1} parent=0
    #allocation2 [shape = 'u8[4096]{0}', space=vmem, size = 0x1000, scoped, tag = 'input window, operand 0, single buffered']
    #allocation3 [shape = 's32[1]{0}', space=sflag, size = 0x4, scoped, tag = 'scoped memory for tpu_custom_call.1']
    #allocation4 [shape = 's32[1]{0}', space=sflag, size = 0x4, scoped, tag = 'scoped memory for tpu_custom_call.1']
    #allocation5 [shape = 'u8[94208]{0}', space=vmem, size = 0x17000, scoped, tag = 'input window, operand 1, single buffered']
    #allocation6 [shape = 's32[1]{0}', space=sflag, size = 0x4, scoped, tag = 'scoped memory for tpu_custom_call.1']
    #allocation7 [shape = 'u8[8192]{0}', space=vmem, size = 0x2000, scoped, tag = 'output window, operand 0, single buffered']
    %7 = vsyncpa [#allocation3], 0
    %8 = vsyncpa [#allocation6], 0
    %9 = vsyncpa [#allocation4], 0
    // Predicated region
    $region2: #{tpu_custom_call.1} parent=1 // pred_check
      _
    $region3: #{tpu_custom_call.1} parent=1 // pred_check_branch
      %11 = sbr.rel (0) target = $region5
    $region4: #{tpu_custom_call.1} parent=1 // pred_region
      %s13 = ssub.s32 128, 128
      %14 = vsyncadd [#allocation3], %s13
      %s16 = sshll.u32 [#allocation2], 4
      %s17 = int_to_ptr.vmem [resolvable:$true] %s16
      %19 = dma.hbm_to_vmem [thread:$0]  %s0, 128, %s17, [#allocation3]
    $region5: #{tpu_custom_call.1} parent=1 // pred_fallthru
      _
    // Predicated region
    $region6: #{tpu_custom_call.1} parent=1 // pred_check
      _
    $region7: #{tpu_custom_call.1} parent=1 // pred_check_branch
      %21 = sbr.rel (0) target = $region9
    $region8: #{tpu_custom_call.1} parent=1 // pred_region
      %s23 = ssub.s32 2944, 2944
      %24 = vsyncadd [#allocation6], %s23
      %s25 = sshll.u32 [#allocation5], 4
      %s26 = int_to_ptr.vmem [resolvable:$true] %s25
      %31 = dma.hbm_to_vmem [thread:$0]  %s1, 2944, %s26, [#allocation6], 64, 64, 4
    $region9: #{tpu_custom_call.1} parent=1 // pred_fallthru
      _
    // Predicated region
    $region10: #{tpu_custom_call.1} parent=1 // pred_check
      _
    $region11: #{tpu_custom_call.1} parent=1 // pred_check_branch
      %33 = sbr.rel (0) target = $region13
    $region12: #{tpu_custom_call.1} parent=1 // pred_region
      %34 = dma.done [#allocation3], 128
    $region13: #{tpu_custom_call.1} parent=1 // pred_fallthru
      _
    // Predicated region
    $region14: #{tpu_custom_call.1} parent=1 // pred_check
      _
    $region15: #{tpu_custom_call.1} parent=1 // pred_check_branch
      %36 = sbr.rel (0) target = $region17
    $region16: #{tpu_custom_call.1} parent=1 // pred_region
      %37 = dma.done [#allocation6], 2944
    $region17: #{tpu_custom_call.1} parent=1 // pred_fallthru
      _
    %v38 = vld [vmem:[#allocation2] sm:$0xff]
    %v39 = vlaneseq
    %v40 = vand.u32 %v39, 127
    %vm41 = vcmp.lt.s32.totalorder %v40, 32
    %v42 = vsel %vm41, %v38, 0.0
    %vm43 = vcmask 523264
    %v44 = vsel %vm43, %v42, 0.0
    %45 = vadd.xlane.f32.xlu0 %v44
    %v46 = vpop.xlane.xlu0 %45
    %v47 = vrot.slane %v46, 4
    %v48 = vadd.f32 %v46, %v47
    %v49 = vrot.slane %v48, 2
    %v50 = vadd.f32 %v48, %v49
    %v51 = vrot.slane %v50, 1
    %v52 = vadd.f32 %v50, %v51
    %s53 = vtos %v52
    %v54 = vrcp.pop 256.0
    %s55 = vtos %v54
    %s56 = smul.f32 %s53, %s55
    %v57 = vsel %vm41, 0.0, %v38
    %v58 = vsel %vm43, %v57, 0.0
    %59 = vadd.xlane.f32.xlu0 %v58
    %v60 = vpop.xlane.xlu0 %59
    %v61 = vrot.slane %v60, 4
    %v62 = vadd.f32 %v60, %v61
    %v63 = vrot.slane %v62, 2
    %v64 = vadd.f32 %v62, %v63
    %v65 = vrot.slane %v64, 1
    %v66 = vadd.f32 %v64, %v65
    %s67 = vtos %v66
    %v68 = vrcp.pop 256.0
    %s69 = vtos %v68
    %s70 = smul.f32 %s67, %s69
    %v71 = vstv %s56
    %v72 = vstv %s70
    %v73 = vsel %vm41, %v71, %v72
    %v74 = vsub.f32 %v38, %v73
    %v75 = vmul.f32 %v74, %v74
    %v76 = vsel %vm41, %v75, 0.0
    %v77 = vsel %vm43, %v76, 0.0
    %78 = vadd.xlane.f32.xlu0 %v77
    %v79 = vpop.xlane.xlu0 %78
    %v80 = vrot.slane %v79, 4
    %v81 = vadd.f32 %v79, %v80
    %v82 = vrot.slane %v81, 2
    %v83 = vadd.f32 %v81, %v82
    %v84 = vrot.slane %v83, 1
    %v85 = vadd.f32 %v83, %v84
    %s86 = vtos %v85
    %v87 = vrcp.pop 256.0
    %s88 = vtos %v87
    %s89 = smul.f32 %s86, %s88
    %v90 = vsel %vm41, 0.0, %v75
    %v91 = vsel %vm43, %v90, 0.0
    %92 = vadd.xlane.f32.xlu0 %v91
    %v93 = vpop.xlane.xlu0 %92
    %v94 = vrot.slane %v93, 4
    %v95 = vadd.f32 %v93, %v94
    %v96 = vrot.slane %v95, 2
    %v97 = vadd.f32 %v95, %v96
    %v98 = vrot.slane %v97, 1
    %v99 = vadd.f32 %v97, %v98
    %s100 = vtos %v99
    %v101 = vrcp.pop 256.0
    %s102 = vtos %v101
    %s103 = smul.f32 %s100, %s102
    %s104 = sadd.f32 %s89, 1e-05
    %v105 = vstv %s104
    %v106 = vrsqrt.pop %v105
    %s107 = vtos %v106
    %s108 = sadd.f32 %s103, 1e-05
    %v109 = vstv %s108
    %v110 = vrsqrt.pop %v109
    %s111 = vtos %v110
    %v112 = vstv %s107
    %v113 = vstv %s111
    %v114 = vsel %vm41, %v112, %v113
    %v115 = vmul.f32 %v74, %v114
    %v116 = vld [vmem:[#allocation5] sm:$0xf]
    %v117 = vld [vmem:[#allocation5 + $0x4] sm:$0xf]
    %v118 = vld [vmem:[#allocation5 + $0x8] sm:$0xf]
    %v119 = vld [vmem:[#allocation5 + $0xc] sm:$0xf]
    %v120 = vld [vmem:[#allocation5 + $0x10] sm:$0xf]
    %v121 = vld [vmem:[#allocation5 + $0x14] sm:$0xf]
    %v122 = vld [vmem:[#allocation5 + $0x18] sm:$0xf]
    %v123 = vld [vmem:[#allocation5 + $0x1c] sm:$0xf]
    %v124 = vunpack.c.l.bf16 %v116
    %v125 = vunpack.c.l.bf16 %v117
    %v126 = vunpack.c.l.bf16 %v118
    %v127 = vunpack.c.l.bf16 %v119
    %v128 = vunpack.c.l.bf16 %v120
    %v129 = vunpack.c.l.bf16 %v121
    %v130 = vunpack.c.l.bf16 %v122
    %v131 = vunpack.c.l.bf16 %v123
    %v132 = vld [vmem:[#allocation5 + $0xa0] sm:$0x1]
    %v133 = vunpack.c.l.bf16 %v132
    %v134 = vlaneseq
    %v135 = vshrl.u32 %v134, 7
    %v136 = vsub.s32 0, %v135
    %v137 = vrot.slane %v133, %v136
    %v139 = vsel %vm43, %v115, 0
    %141 = vmatprep.subr.mxu0 0.0
    %142 = vmatpush1.msra.mxu0 %v124
    %143 = vmatprep.subr.mxu0 0.0
    %144 = vmatpush1.msra.mxu0 %v125
    %145 = vmatprep.subr.mxu0 0.0
    %146 = vmatpush1.msra.mxu0 %v126
    %147 = vmatprep.subr.mxu0 0.0
    %148 = vmatpush1.msra.mxu0 %v127
    %149 = vmatprep.subr.mxu0 0.0
    %150 = vmatpush1.msra.mxu0 %v128
    %151 = vmatprep.subr.mxu0 0.0
    %152 = vmatpush1.msra.mxu0 %v129
    %153 = vmatprep.subr.mxu0 0.0
    %154 = vmatpush1.msra.mxu0 %v130
    %155 = vmatprep.subr.mxu0 0.0
    %156 = vmatpush1.msra.mxu0 %v131
    %157 = vmatprep.subr.mxu0 0.0
    %158 = vmatpush1.msra.mxu0 0.0
    %159 = vmatprep.subr.mxu0 0.0
    %160 = vmatpush1.msra.mxu0 0.0
    %161 = vmatprep.subr.mxu0 0.0
    %162 = vmatpush1.msra.mxu0 0.0
    %163 = vmatprep.subr.mxu0 0.0
    %164 = vmatpush1.msra.mxu0 0.0
    %165 = vmatprep.subr.mxu0 0.0
    %166 = vmatpush1.msra.mxu0 0.0
    %167 = vmatprep.subr.mxu0 0.0
    %168 = vmatpush1.msra.mxu0 0.0
    %169 = vmatprep.subr.mxu0 0.0
    %170 = vmatpush1.msra.mxu0 0.0
    %171 = vmatprep.subr.mxu0 0.0
    %172 = vmatpush1.msra.mxu0 0.0
    %173 = vmatprep.subr.mxu0 0.0
    %174 = vmatpush1.msra.mxu0 0.0
    %175 = vmatprep.subr.mxu0 0.0
    %176 = vmatpush1.msra.mxu0 0.0
    %177 = vmatprep.subr.mxu0 0.0
    %178 = vmatpush1.msra.mxu0 0.0
    %179 = vmatprep.subr.mxu0 0.0
    %180 = vmatpush1.msra.mxu0 0.0
    %181 = vmatprep.subr.mxu0 0.0
    %182 = vmatpush1.msra.mxu0 0.0
    %183 = vmatprep.subr.mxu0 0.0
    %184 = vmatpush1.msra.mxu0 0.0
    %185 = vmatprep.subr.mxu0 0.0
    %186 = vmatpush1.msra.mxu0 0.0
    %187 = vmatprep.subr.mxu0 0.0
    %188 = vmatpush1.msra.mxu0 0.0
    %189 = vmatprep.subr.mxu0 0.0
    %190 = vmatpush1.msra.mxu0 0.0
    %191 = vmatprep.subr.mxu0 0.0
    %192 = vmatpush1.msra.mxu0 0.0
    %193 = vmatprep.subr.mxu0 0.0
    %194 = vmatpush1.msra.mxu0 0.0
    %195 = vmatprep.subr.mxu0 0.0
    %196 = vmatpush1.msra.mxu0 0.0
    %197 = vmatprep.subr.mxu0 0.0
    %198 = vmatpush1.msra.mxu0 0.0
    %199 = vmatprep.subr.mxu0 0.0
    %200 = vmatpush1.msra.mxu0 0.0
    %201 = vmatprep.subr.mxu0 0.0
    %202 = vmatpush1.msra.mxu0 0.0
    %203 = vmatprep.subr.mxu0 0.0
    %204 = vmatpush1.msra.mxu0 0.0
    %205 = vmatprep.mubr.f32.mxu0 0.0
    %206 = vmatmul.mubr.f32.gmra.mrb[0].mxu0 %v139
    %v207 = vpop.f32.mrb[0].mxu0
    %v208 = vadd.f32 %v137, %v207
    %v209 = vpop.f32.mrb[0].mxu0
    %210 = vdwg.mxu0
    %v211 = vmax.f32 %v208, 0.0
    %v212 = vld [vmem:[#allocation5 + $0x20] sm:$0xf]
    %v213 = vld [vmem:[#allocation5 + $0x24] sm:$0xf]
    %v214 = vld [vmem:[#allocation5 + $0x28] sm:$0xf]
    %v215 = vld [vmem:[#allocation5 + $0x2c] sm:$0xf]
    %v216 = vld [vmem:[#allocation5 + $0x30] sm:$0xf]
    %v217 = vld [vmem:[#allocation5 + $0x34] sm:$0xf]
    %v218 = vld [vmem:[#allocation5 + $0x38] sm:$0xf]
    %v219 = vld [vmem:[#allocation5 + $0x3c] sm:$0xf]
    %v220 = vld [vmem:[#allocation5 + $0x40] sm:$0xf]
    %v221 = vld [vmem:[#allocation5 + $0x44] sm:$0xf]
    %v222 = vld [vmem:[#allocation5 + $0x48] sm:$0xf]
    %v223 = vld [vmem:[#allocation5 + $0x4c] sm:$0xf]
    %v224 = vld [vmem:[#allocation5 + $0x50] sm:$0xf]
    %v225 = vld [vmem:[#allocation5 + $0x54] sm:$0xf]
    %v226 = vld [vmem:[#allocation5 + $0x58] sm:$0xf]
    %v227 = vld [vmem:[#allocation5 + $0x5c] sm:$0xf]
    %v228 = vunpack.c.l.bf16 %v212
    %v229 = vunpack.c.l.bf16 %v213
    %v230 = vunpack.c.l.bf16 %v214
    %v231 = vunpack.c.l.bf16 %v215
    %v232 = vunpack.c.l.bf16 %v216
    %v233 = vunpack.c.l.bf16 %v217
    %v234 = vunpack.c.l.bf16 %v218
    %v235 = vunpack.c.l.bf16 %v219
    %v236 = vunpack.c.l.bf16 %v220
    %v237 = vunpack.c.l.bf16 %v221
    %v238 = vunpack.c.l.bf16 %v222
    %v239 = vunpack.c.l.bf16 %v223
    %v240 = vunpack.c.l.bf16 %v224
    %v241 = vunpack.c.l.bf16 %v225
    %v242 = vunpack.c.l.bf16 %v226
    %v243 = vunpack.c.l.bf16 %v227
    %v244 = vld [vmem:[#allocation5 + $0xa8] sm:$0x1]
    %v245 = vunpack.c.l.bf16 %v244
    %v246 = vld [vmem:[#allocation5 + $0x60] sm:$0xf]
    %v247 = vld [vmem:[#allocation5 + $0x64] sm:$0xf]
    %v248 = vld [vmem:[#allocation5 + $0x68] sm:$0xf]
    %v249 = vld [vmem:[#allocation5 + $0x6c] sm:$0xf]
    %v250 = vld [vmem:[#allocation5 + $0x70] sm:$0xf]
    %v251 = vld [vmem:[#allocation5 + $0x74] sm:$0xf]
    %v252 = vld [vmem:[#allocation5 + $0x78] sm:$0xf]
    %v253 = vld [vmem:[#allocation5 + $0x7c] sm:$0xf]
    %v254 = vld [vmem:[#allocation5 + $0x80] sm:$0xf]
    %v255 = vld [vmem:[#allocation5 + $0x84] sm:$0xf]
    %v256 = vld [vmem:[#allocation5 + $0x88] sm:$0xf]
    %v257 = vld [vmem:[#allocation5 + $0x8c] sm:$0xf]
    %v258 = vld [vmem:[#allocation5 + $0x90] sm:$0xf]
    %v259 = vld [vmem:[#allocation5 + $0x94] sm:$0xf]
    %v260 = vld [vmem:[#allocation5 + $0x98] sm:$0xf]
    %v261 = vld [vmem:[#allocation5 + $0x9c] sm:$0xf]
    %v262 = vunpack.c.l.bf16 %v246
    %v263 = vunpack.c.l.bf16 %v247
    %v264 = vunpack.c.l.bf16 %v248
    %v265 = vunpack.c.l.bf16 %v249
    %v266 = vunpack.c.l.bf16 %v250
    %v267 = vunpack.c.l.bf16 %v251
    %v268 = vunpack.c.l.bf16 %v252
    %v269 = vunpack.c.l.bf16 %v253
    %v270 = vunpack.c.l.bf16 %v254
    %v271 = vunpack.c.l.bf16 %v255
    %v272 = vunpack.c.l.bf16 %v256
    %v273 = vunpack.c.l.bf16 %v257
    %v274 = vunpack.c.l.bf16 %v258
    %v275 = vunpack.c.l.bf16 %v259
    %v276 = vunpack.c.l.bf16 %v260
    %v277 = vunpack.c.l.bf16 %v261
    %v278 = vld [vmem:[#allocation5 + $0xb0] sm:$0x1]
    %v279 = vunpack.c.l.bf16 %v278
    %v280 = vlaneseq
    %v281 = vshrl.u32 %v280, 7
    %v282 = vsub.s32 0, %v281
    %v283 = vrot.slane %v245, %v282
    %284 = vmatprep.subr.mxu0 0.0
    %285 = vmatpush1.msra.mxu0 %v228
    %286 = vmatprep.subr.mxu0 0.0
    %287 = vmatpush1.msra.mxu0 %v229
    %288 = vmatprep.subr.mxu0 0.0
    %289 = vmatpush1.msra.mxu0 %v230
    %290 = vmatprep.subr.mxu0 0.0
    %291 = vmatpush1.msra.mxu0 %v231
    %292 = vmatprep.subr.mxu0 0.0
    %293 = vmatpush1.msra.mxu0 %v232
    %294 = vmatprep.subr.mxu0 0.0
    %295 = vmatpush1.msra.mxu0 %v233
    %296 = vmatprep.subr.mxu0 0.0
    %297 = vmatpush1.msra.mxu0 %v234
    %298 = vmatprep.subr.mxu0 0.0
    %299 = vmatpush1.msra.mxu0 %v235
    %300 = vmatprep.subr.mxu0 0.0
    %301 = vmatpush1.msra.mxu0 %v236
    %302 = vmatprep.subr.mxu0 0.0
    %303 = vmatpush1.msra.mxu0 %v237
    %304 = vmatprep.subr.mxu0 0.0
    %305 = vmatpush1.msra.mxu0 %v238
    %306 = vmatprep.subr.mxu0 0.0
    %307 = vmatpush1.msra.mxu0 %v239
    %308 = vmatprep.subr.mxu0 0.0
    %309 = vmatpush1.msra.mxu0 %v240
    %310 = vmatprep.subr.mxu0 0.0
    %311 = vmatpush1.msra.mxu0 %v241
    %312 = vmatprep.subr.mxu0 0.0
    %313 = vmatpush1.msra.mxu0 %v242
    %314 = vmatprep.subr.mxu0 0.0
    %315 = vmatpush1.msra.mxu0 %v243
    %316 = vmatprep.subr.mxu0 0.0
    %317 = vmatpush1.msra.mxu0 0.0
    %318 = vmatprep.subr.mxu0 0.0
    %319 = vmatpush1.msra.mxu0 0.0
    %320 = vmatprep.subr.mxu0 0.0
    %321 = vmatpush1.msra.mxu0 0.0
    %322 = vmatprep.subr.mxu0 0.0
    %323 = vmatpush1.msra.mxu0 0.0
    %324 = vmatprep.subr.mxu0 0.0
    %325 = vmatpush1.msra.mxu0 0.0
    %326 = vmatprep.subr.mxu0 0.0
    %327 = vmatpush1.msra.mxu0 0.0
    %328 = vmatprep.subr.mxu0 0.0
    %329 = vmatpush1.msra.mxu0 0.0
    %330 = vmatprep.subr.mxu0 0.0
    %331 = vmatpush1.msra.mxu0 0.0
    %332 = vmatprep.subr.mxu0 0.0
    %333 = vmatpush1.msra.mxu0 0.0
    %334 = vmatprep.subr.mxu0 0.0
    %335 = vmatpush1.msra.mxu0 0.0
    %336 = vmatprep.subr.mxu0 0.0
    %337 = vmatpush1.msra.mxu0 0.0
    %338 = vmatprep.subr.mxu0 0.0
    %339 = vmatpush1.msra.mxu0 0.0
    %340 = vmatprep.subr.mxu0 0.0
    %341 = vmatpush1.msra.mxu0 0.0
    %342 = vmatprep.subr.mxu0 0.0
    %343 = vmatpush1.msra.mxu0 0.0
    %344 = vmatprep.subr.mxu0 0.0
    %345 = vmatpush1.msra.mxu0 0.0
    %346 = vmatprep.subr.mxu0 0.0
    %347 = vmatpush1.msra.mxu0 0.0
    %348 = vmatprep.mubr.f32.mxu0 0.0
    %349 = vmatmul.mubr.f32.gmra.mrb[0].mxu0 %v211
    %v350 = vpop.f32.mrb[0].mxu0
    %v351 = vadd.f32 %v283, %v350
    %v352 = vpop.f32.mrb[0].mxu0
    %353 = vdwg.mxu0
    %v354 = vlaneseq
    %v355 = vshrl.u32 %v354, 7
    %v356 = vsub.s32 0, %v355
    %v357 = vrot.slane %v279, %v356
    %358 = vmatprep.subr.mxu0 0.0
    %359 = vmatpush1.msra.mxu0 %v262
    %360 = vmatprep.subr.mxu0 0.0
    %361 = vmatpush1.msra.mxu0 %v263
    %362 = vmatprep.subr.mxu0 0.0
    %363 = vmatpush1.msra.mxu0 %v264
    %364 = vmatprep.subr.mxu0 0.0
    %365 = vmatpush1.msra.mxu0 %v265
    %366 = vmatprep.subr.mxu0 0.0
    %367 = vmatpush1.msra.mxu0 %v266
    %368 = vmatprep.subr.mxu0 0.0
    %369 = vmatpush1.msra.mxu0 %v267
    %370 = vmatprep.subr.mxu0 0.0
    %371 = vmatpush1.msra.mxu0 %v268
    %372 = vmatprep.subr.mxu0 0.0
    %373 = vmatpush1.msra.mxu0 %v269
    %374 = vmatprep.subr.mxu0 0.0
    %375 = vmatpush1.msra.mxu0 %v270
    %376 = vmatprep.subr.mxu0 0.0
    %377 = vmatpush1.msra.mxu0 %v271
    %378 = vmatprep.subr.mxu0 0.0
    %379 = vmatpush1.msra.mxu0 %v272
    %380 = vmatprep.subr.mxu0 0.0
    %381 = vmatpush1.msra.mxu0 %v273
    %382 = vmatprep.subr.mxu0 0.0
    %383 = vmatpush1.msra.mxu0 %v274
    %384 = vmatprep.subr.mxu0 0.0
    %385 = vmatpush1.msra.mxu0 %v275
    %386 = vmatprep.subr.mxu0 0.0
    %387 = vmatpush1.msra.mxu0 %v276
    %388 = vmatprep.subr.mxu0 0.0
    %389 = vmatpush1.msra.mxu0 %v277
    %390 = vmatprep.subr.mxu0 0.0
    %391 = vmatpush1.msra.mxu0 0.0
    %392 = vmatprep.subr.mxu0 0.0
    %393 = vmatpush1.msra.mxu0 0.0
    %394 = vmatprep.subr.mxu0 0.0
    %395 = vmatpush1.msra.mxu0 0.0
    %396 = vmatprep.subr.mxu0 0.0
    %397 = vmatpush1.msra.mxu0 0.0
    %398 = vmatprep.subr.mxu0 0.0
    %399 = vmatpush1.msra.mxu0 0.0
    %400 = vmatprep.subr.mxu0 0.0
    %401 = vmatpush1.msra.mxu0 0.0
    %402 = vmatprep.subr.mxu0 0.0
    %403 = vmatpush1.msra.mxu0 0.0
    %404 = vmatprep.subr.mxu0 0.0
    %405 = vmatpush1.msra.mxu0 0.0
    %406 = vmatprep.subr.mxu0 0.0
    %407 = vmatpush1.msra.mxu0 0.0
    %408 = vmatprep.subr.mxu0 0.0
    %409 = vmatpush1.msra.mxu0 0.0
    %410 = vmatprep.subr.mxu0 0.0
    %411 = vmatpush1.msra.mxu0 0.0
    %412 = vmatprep.subr.mxu0 0.0
    %413 = vmatpush1.msra.mxu0 0.0
    %414 = vmatprep.subr.mxu0 0.0
    %415 = vmatpush1.msra.mxu0 0.0
    %416 = vmatprep.subr.mxu0 0.0
    %417 = vmatpush1.msra.mxu0 0.0
    %418 = vmatprep.subr.mxu0 0.0
    %419 = vmatpush1.msra.mxu0 0.0
    %420 = vmatprep.subr.mxu0 0.0
    %421 = vmatpush1.msra.mxu0 0.0
    %422 = vmatprep.mubr.f32.mxu0 0.0
    %423 = vmatmul.mubr.f32.gmra.mrb[0].mxu0 %v211
    %v424 = vpop.f32.mrb[0].mxu0
    %v425 = vadd.f32 %v357, %v424
    %v426 = vpop.f32.mrb[0].mxu0
    %427 = vdwg.mxu0
    %428 = vmax.xlane.f32.xlu0 %v425
    %v429 = vpop.xlane.xlu0 %428
    %vm430 = vcmp.eq.f32.partialorder %v425, %v429
    %v431 = vsel %vm430, %v40, 128
    %v432 = vand.u32 %v431, 65535
    %v433 = vshra.s32 %v431, 16
    %v434 = vcvt.s32.f32 %v432
    %v435 = vcvt.s32.f32 %v433
    %436 = vmin.xlane.f32.xlu0 %v435
    %v437 = vpop.xlane.xlu0 %436
    %vm438 = vcmp.eq.f32.partialorder %v435, %v437
    %v439 = vsel %vm438, %v434, inf
    %440 = vmin.xlane.f32.xlu0 %v439
    %v441 = vpop.xlane.xlu0 %440
    %v442 = vcvt.f32.s32 %v441
    %v443 = vcvt.f32.s32 %v437
    %v444 = vshll.u32 %v443, 16
    %v445 = vadd.s32 %v444, %v442
    %v446 = vcvt.s32.f32 %v445
    %v447 = vlaneseq
    %v448 = vshrl.u32 %v447, 7
    %vm449 = vcmp.eq.s32.totalorder %v448, %v40
    %v450 = vsel %vm449, %v446, 0.0
    %v451 = vrot.slane %v450, 4
    %v452 = vadd.f32 %v450, %v451
    %v453 = vrot.slane %v452, 2
    %v454 = vadd.f32 %v452, %v453
    %v455 = vrot.slane %v454, 1
    %v456 = vadd.f32 %v454, %v455
    %457 = vst [vmem:[#allocation7] sm:$0xff] %v351
    %458 = vst [vmem:[#allocation7 + $0x8] sm:$0xff] %v456
    // Predicated region
    $region18: #{tpu_custom_call.1} parent=1 // pred_check
      _
    $region19: #{tpu_custom_call.1} parent=1 // pred_check_branch
      %460 = sbr.rel (0) target = $region21
    $region20: #{tpu_custom_call.1} parent=1 // pred_region
      %s462 = ssub.s32 256, 256
      %463 = vsyncadd [#allocation4], %s462
      %s464 = sshll.u32 [#allocation7], 4
      %s465 = int_to_ptr.vmem [resolvable:$true] %s464
      %470 = dma.vmem_to_hbm [thread:$0]  %s465, 256, %s2, [#allocation4], 128, 128, 8
    $region21: #{tpu_custom_call.1} parent=1 // pred_fallthru
      _
    // Predicated region
    $region22: #{tpu_custom_call.1} parent=1 // pred_check
      _
    $region23: #{tpu_custom_call.1} parent=1 // pred_check_branch
      %472 = sbr.rel (0) target = $region25
    $region24: #{tpu_custom_call.1} parent=1 // pred_region
      %473 = dma.done [#allocation4], 256
    $region25: #{tpu_custom_call.1} parent=1 // pred_fallthru
      _
    %474 = vsyncpa [#allocation3], 1
    %475 = vsyncpa [#allocation6], 1
    %476 = vsyncpa [#allocation4], 1

</llo_original>
